<compile_context>
chip_gen: v6e
topology: v6e:2x2x1
jax: 0.10.0
libtpu: 0.0.40
codegen_flags: <defaults>
</compile_context>

<pallas_src>
import functools

import jax
import jax.numpy as jnp
from jax.experimental import pallas as pl
from jax.experimental.pallas import tpu as pltpu

PAD = 23            # ConstantPad1d(23, 0.25)
PAD_VALUE = 0.25
KSIZE = 24          # Conv1d kernel size
C_IN = 4
C_PACK = 8          # channels zero-padded to one sublane tile
C_OUT = 16
POOL_K = 21         # MaxPool1d(kernel_size=21, stride=21 (default), padding=1)
POOL_PAD = 1
MAX_B_TILE = 128    # batch tile (lane-aligned output blocks when B > tile)


def _csnn_kernel(x_ref, w_ref, cb_ref, comb_ref, db_ref, o_ref, *,
                 bt, l_conv, n_pool):
    # x_ref   : (bt, 8, L)      raw input, channels zero-padded 4 -> 8
    # w_ref   : (16, 24*8)      im2col conv weight, tap-major, 8-ch padded
    # cb_ref  : (16, 1)         conv bias
    # comb_ref: (16, n_pool)    weighted_sum * dense weight (Linear folded in)
    # db_ref  : (1, 1)  SMEM    dense bias
    # o_ref   : (1, bt)         sigmoid output, lane-dense over batch
    pad_blk = jnp.full((C_PACK, PAD), PAD_VALUE, jnp.float32)

    # --- im2col patches for the whole batch tile: (24*8, bt*l_conv) ---------
    cols = []
    for b in range(bt):                                     # static batch loop
        # ConstantPad1d(23, 0.25) done in-kernel (lane concat, no HBM trip).
        xp = jnp.concatenate([pad_blk, x_ref[b], pad_blk], axis=-1)  # (8, L+46)
        cols.append(jnp.concatenate(
            [xp[:, k:k + l_conv] for k in range(KSIZE)], axis=0))    # (192, lc)
    patches = jnp.concatenate(cols, axis=-1)                # (192, bt*l_conv)

    # --- Conv1d(4->16, k=24) + bias + ReLU: ONE MXU matmul for the tile -----
    conv = jnp.dot(w_ref[...], patches, preferred_element_type=jnp.float32)
    conv = jnp.maximum(conv + cb_ref[...], 0.0)             # (16, bt*l_conv)

    comb = comb_ref[...]                                    # (16, n_pool)
    logits = []
    for b in range(bt):
        cv = conv[:, b * l_conv:(b + 1) * l_conv]           # (16, l_conv)

        # MaxPool1d(k=21, stride=21, padding=1, floor mode).  Clamping each
        # window to the valid range is equivalent to the -inf padding because
        # conv >= 0 after ReLU.
        pools = []
        for i in range(n_pool):
            s = max(0, POOL_K * i - POOL_PAD)
            e = min(l_conv, POOL_K * i + POOL_K - POOL_PAD)
            pools.append(jnp.max(cv[:, s:e], axis=-1, keepdims=True))
        pooled = jnp.concatenate(pools, axis=-1)            # (16, n_pool)

        # "separable_conv" + Linear(16,1) fused: comb = wsum * dense_w.
        t = jnp.sum(pooled * comb, axis=-1, keepdims=True)  # (16, 1)
        logits.append(jnp.sum(t, axis=0, keepdims=True))    # (1, 1)

    # TODO(synk): training-mode dropout masking not implemented (eval no-op).
    z = jnp.concatenate(logits, axis=-1) + db_ref[0, 0]     # (1, bt)
    o_ref[...] = 1.0 / (1.0 + jnp.exp(-z))                  # vectorized sigmoid


def csnn_forward(x, conv_w, conv_b, wsum, dense_w, dense_b):
    """x: (B, 4, L) float32, NCW.  Returns (B, 1) sigmoid outputs."""
    B, cin, L = x.shape
    assert cin == C_IN
    lp = L + 2 * PAD
    l_conv = lp - KSIZE + 1
    n_pool = (l_conv + 2 * POOL_PAD - POOL_K) // POOL_K + 1
    assert n_pool == wsum.shape[-1], (
        "pooled time length must equal weighted_sum width (6)")

    if B <= MAX_B_TILE:
        bt, b_pad = B, B
    else:
        bt = MAX_B_TILE
        b_pad = pl.cdiv(B, bt) * bt

    # Channels padded 4 -> 8 (aligned sublane pieces for the in-kernel im2col);
    # batch padded up to a multiple of the batch tile (sliced off afterwards).
    x8 = jnp.pad(x.astype(jnp.float32),
                 ((0, b_pad - B), (0, C_PACK - C_IN), (0, 0)))

    # Conv weight -> im2col layout: (16, 4, 24) -> (16, 24, 8) -> (16, 192),
    # zero columns for the padded channels.
    w_full = jnp.pad(jnp.transpose(conv_w, (0, 2, 1)).astype(jnp.float32),
                     ((0, 0), (0, 0), (0, C_PACK - C_IN))
                     ).reshape(C_OUT, KSIZE * C_PACK)
    cb = conv_b.reshape(C_OUT, 1).astype(jnp.float32)
    comb = (wsum * dense_w.reshape(C_OUT, 1)).astype(jnp.float32)  # fold Linear
    db = dense_b.reshape(1, 1).astype(jnp.float32)

    kernel = functools.partial(_csnn_kernel, bt=bt, l_conv=l_conv,
                               n_pool=n_pool)
    nb = b_pad // bt
    out = pl.pallas_call(
        kernel,
        out_shape=jax.ShapeDtypeStruct((1, b_pad), jnp.float32),
        grid=(nb,),
        in_specs=[
            pl.BlockSpec((bt, C_PACK, L), lambda i: (i, 0, 0)),
            pl.BlockSpec((C_OUT, KSIZE * C_PACK), lambda i: (0, 0)),
            pl.BlockSpec((C_OUT, 1), lambda i: (0, 0)),
            pl.BlockSpec((C_OUT, n_pool), lambda i: (0, 0)),
            pl.BlockSpec(memory_space=pltpu.MemorySpace.SMEM),   # dense bias
        ],
        out_specs=pl.BlockSpec((1, bt), lambda i: (0, i)),
        compiler_params=pltpu.CompilerParams(
            dimension_semantics=("parallel",)),   # megacore on v7x
    )(x8, w_full, cb, comb, db)
    return out[:, :B].T                                      # (B, 1)


def ref_forward(x, conv_w, conv_b, wsum, dense_w, dense_b):
    """Pure-JAX reference matching the PyTorch forward (eval mode)."""
    xp = jnp.pad(x, ((0, 0), (0, 0), (PAD, PAD)), constant_values=PAD_VALUE)
    conv = jax.lax.conv_general_dilated(
        xp, conv_w, window_strides=(1,), padding='VALID',
        dimension_numbers=('NCH', 'OIH', 'NCH'))
    conv = jnp.maximum(conv + conv_b[None, :, None], 0.0)
    l_conv = conv.shape[-1]
    n_pool = (l_conv + 2 * POOL_PAD - POOL_K) // POOL_K + 1
    cp = jnp.pad(conv, ((0, 0), (0, 0), (POOL_PAD, POOL_PAD)),
                 constant_values=-jnp.inf)
    pooled = jnp.stack(
        [jnp.max(cp[..., POOL_K * i:POOL_K * i + POOL_K], axis=-1)
         for i in range(n_pool)], axis=-1)                    # (B, 16, n_pool)
    y = jnp.sum(pooled * wsum[None], axis=-1)                 # (B, 16)
    logit = y @ dense_w + dense_b[None, :]                    # (B, 1)
    return jax.nn.sigmoid(logit)


if __name__ == "__main__":
    key = jax.random.PRNGKey(0)
    ks = jax.random.split(key, 6)

    # L must give a pooled time length of 6 to match the (16, 6) weighted_sum.
    B, L = 2, 107
    x = jax.random.normal(ks[0], (B, C_IN, L), jnp.float32)

    conv_w = 0.1 * jax.random.normal(ks[1], (C_OUT, C_IN, KSIZE), jnp.float32)
    conv_b = 0.1 * jax.random.normal(ks[2], (C_OUT,), jnp.float32)
    wsum = jax.random.normal(ks[3], (C_OUT, 6), jnp.float32)
    # torch Linear(16,1) weight is (1,16); store its transpose (16,1).
    dense_w = 0.1 * jax.random.normal(ks[4], (C_OUT, 1), jnp.float32)
    dense_b = 0.1 * jax.random.normal(ks[5], (1,), jnp.float32)

    out = jax.block_until_ready(
        csnn_forward(x, conv_w, conv_b, wsum, dense_w, dense_b))
    ref = ref_forward(x, conv_w, conv_b, wsum, dense_w, dense_b)

    assert out.shape == (B, 1), out.shape
    assert jnp.allclose(out, ref, atol=1e-4, rtol=1e-4), (out, ref)
    print("KERNEL_OK")
</pallas_src>

<mosaic_0001>
module attributes {stable_mosaic.version = 11 : i64} {
  func.func @_csnn_kernel(%arg0: i32, %arg1: memref<2x8x107xf32, #tpu.memory_space<vmem>>, %arg2: memref<16x192xf32, #tpu.memory_space<vmem>>, %arg3: memref<16x1xf32, #tpu.memory_space<vmem>>, %arg4: memref<16x6xf32, #tpu.memory_space<vmem>>, %arg5: memref<1x1xf32, #tpu.memory_space<smem>>, %arg6: memref<1x2xf32, #tpu.memory_space<vmem>>) attributes {dimension_semantics = [#tpu.dimension_semantics<parallel>], iteration_bounds = array<i64: 1>, scalar_prefetch = 0 : i64, scratch_operands = 0 : i64, tpu.core_type = #tpu.core_type<tc>, window_params = [{transform_indices = @transform_0, window_bounds = array<i64: 2, 8, 107>}, {pipeline_mode = #tpu.pipeline_mode<synchronous>, transform_indices = @transform_1, window_bounds = array<i64: 16, 192>}, {pipeline_mode = #tpu.pipeline_mode<synchronous>, transform_indices = @transform_2, window_bounds = array<i64: 16, 1>}, {pipeline_mode = #tpu.pipeline_mode<synchronous>, transform_indices = @transform_3, window_bounds = array<i64: 16, 6>}, {transform_indices = @transform_4, window_bounds = array<i64: 1, 1>}, {transform_indices = @transform_5, window_bounds = array<i64: 1, 2>}]} {
    %cst = arith.constant 2.500000e-01 : f32
    %0 = vector.broadcast %cst : f32 to vector<8x23xf32>
    %c0 = arith.constant 0 : index
    %c0_0 = arith.constant 0 : index
    %c0_1 = arith.constant 0 : index
    %1 = vector.load %arg1[%c0, %c0_0, %c0_1] : memref<2x8x107xf32, #tpu.memory_space<vmem>>, vector<1x8x107xf32>
    %2 = vector.shape_cast %1 : vector<1x8x107xf32> to vector<8x107xf32>
    %3 = tpu.concatenate %0, %2, %0 in 1 : vector<8x23xf32>, vector<8x107xf32>, vector<8x23xf32> -> vector<8x153xf32>
    %4 = vector.extract_strided_slice %3 {offsets = [0, 0], sizes = [8, 130], strides = [1, 1]} : vector<8x153xf32> to vector<8x130xf32>
    %5 = vector.extract_strided_slice %3 {offsets = [0, 1], sizes = [8, 130], strides = [1, 1]} : vector<8x153xf32> to vector<8x130xf32>
    %6 = vector.extract_strided_slice %3 {offsets = [0, 2], sizes = [8, 130], strides = [1, 1]} : vector<8x153xf32> to vector<8x130xf32>
    %7 = vector.extract_strided_slice %3 {offsets = [0, 3], sizes = [8, 130], strides = [1, 1]} : vector<8x153xf32> to vector<8x130xf32>
    %8 = vector.extract_strided_slice %3 {offsets = [0, 4], sizes = [8, 130], strides = [1, 1]} : vector<8x153xf32> to vector<8x130xf32>
    %9 = vector.extract_strided_slice %3 {offsets = [0, 5], sizes = [8, 130], strides = [1, 1]} : vector<8x153xf32> to vector<8x130xf32>
    %10 = vector.extract_strided_slice %3 {offsets = [0, 6], sizes = [8, 130], strides = [1, 1]} : vector<8x153xf32> to vector<8x130xf32>
    %11 = vector.extract_strided_slice %3 {offsets = [0, 7], sizes = [8, 130], strides = [1, 1]} : vector<8x153xf32> to vector<8x130xf32>
    %12 = vector.extract_strided_slice %3 {offsets = [0, 8], sizes = [8, 130], strides = [1, 1]} : vector<8x153xf32> to vector<8x130xf32>
    %13 = vector.extract_strided_slice %3 {offsets = [0, 9], sizes = [8, 130], strides = [1, 1]} : vector<8x153xf32> to vector<8x130xf32>
    %14 = vector.extract_strided_slice %3 {offsets = [0, 10], sizes = [8, 130], strides = [1, 1]} : vector<8x153xf32> to vector<8x130xf32>
    %15 = vector.extract_strided_slice %3 {offsets = [0, 11], sizes = [8, 130], strides = [1, 1]} : vector<8x153xf32> to vector<8x130xf32>
    %16 = vector.extract_strided_slice %3 {offsets = [0, 12], sizes = [8, 130], strides = [1, 1]} : vector<8x153xf32> to vector<8x130xf32>
    %17 = vector.extract_strided_slice %3 {offsets = [0, 13], sizes = [8, 130], strides = [1, 1]} : vector<8x153xf32> to vector<8x130xf32>
    %18 = vector.extract_strided_slice %3 {offsets = [0, 14], sizes = [8, 130], strides = [1, 1]} : vector<8x153xf32> to vector<8x130xf32>
    %19 = vector.extract_strided_slice %3 {offsets = [0, 15], sizes = [8, 130], strides = [1, 1]} : vector<8x153xf32> to vector<8x130xf32>
    %20 = vector.extract_strided_slice %3 {offsets = [0, 16], sizes = [8, 130], strides = [1, 1]} : vector<8x153xf32> to vector<8x130xf32>
    %21 = vector.extract_strided_slice %3 {offsets = [0, 17], sizes = [8, 130], strides = [1, 1]} : vector<8x153xf32> to vector<8x130xf32>
    %22 = vector.extract_strided_slice %3 {offsets = [0, 18], sizes = [8, 130], strides = [1, 1]} : vector<8x153xf32> to vector<8x130xf32>
    %23 = vector.extract_strided_slice %3 {offsets = [0, 19], sizes = [8, 130], strides = [1, 1]} : vector<8x153xf32> to vector<8x130xf32>
    %24 = vector.extract_strided_slice %3 {offsets = [0, 20], sizes = [8, 130], strides = [1, 1]} : vector<8x153xf32> to vector<8x130xf32>
    %25 = vector.extract_strided_slice %3 {offsets = [0, 21], sizes = [8, 130], strides = [1, 1]} : vector<8x153xf32> to vector<8x130xf32>
    %26 = vector.extract_strided_slice %3 {offsets = [0, 22], sizes = [8, 130], strides = [1, 1]} : vector<8x153xf32> to vector<8x130xf32>
    %27 = vector.extract_strided_slice %3 {offsets = [0, 23], sizes = [8, 130], strides = [1, 1]} : vector<8x153xf32> to vector<8x130xf32>
    %28 = tpu.concatenate %4, %5, %6, %7, %8, %9, %10, %11, %12, %13, %14, %15, %16, %17, %18, %19 in 0 : vector<8x130xf32>, vector<8x130xf32>, vector<8x130xf32>, vector<8x130xf32>, vector<8x130xf32>, vector<8x130xf32>, vector<8x130xf32>, vector<8x130xf32>, vector<8x130xf32>, vector<8x130xf32>, vector<8x130xf32>, vector<8x130xf32>, vector<8x130xf32>, vector<8x130xf32>, vector<8x130xf32>, vector<8x130xf32> -> vector<128x130xf32>
    %29 = tpu.concatenate %20, %21, %22, %23, %24, %25, %26, %27 in 0 : vector<8x130xf32>, vector<8x130xf32>, vector<8x130xf32>, vector<8x130xf32>, vector<8x130xf32>, vector<8x130xf32>, vector<8x130xf32>, vector<8x130xf32> -> vector<64x130xf32>
    %30 = tpu.concatenate %28, %29 in 0 : vector<128x130xf32>, vector<64x130xf32> -> vector<192x130xf32>
    %c1 = arith.constant 1 : index
    %c0_2 = arith.constant 0 : index
    %c0_3 = arith.constant 0 : index
    %31 = vector.load %arg1[%c1, %c0_2, %c0_3] : memref<2x8x107xf32, #tpu.memory_space<vmem>>, vector<1x8x107xf32>
    %32 = vector.shape_cast %31 : vector<1x8x107xf32> to vector<8x107xf32>
    %33 = tpu.concatenate %0, %32, %0 in 1 : vector<8x23xf32>, vector<8x107xf32>, vector<8x23xf32> -> vector<8x153xf32>
    %34 = vector.extract_strided_slice %33 {offsets = [0, 0], sizes = [8, 130], strides = [1, 1]} : vector<8x153xf32> to vector<8x130xf32>
    %35 = vector.extract_strided_slice %33 {offsets = [0, 1], sizes = [8, 130], strides = [1, 1]} : vector<8x153xf32> to vector<8x130xf32>
    %36 = vector.extract_strided_slice %33 {offsets = [0, 2], sizes = [8, 130], strides = [1, 1]} : vector<8x153xf32> to vector<8x130xf32>
    %37 = vector.extract_strided_slice %33 {offsets = [0, 3], sizes = [8, 130], strides = [1, 1]} : vector<8x153xf32> to vector<8x130xf32>
    %38 = vector.extract_strided_slice %33 {offsets = [0, 4], sizes = [8, 130], strides = [1, 1]} : vector<8x153xf32> to vector<8x130xf32>
    %39 = vector.extract_strided_slice %33 {offsets = [0, 5], sizes = [8, 130], strides = [1, 1]} : vector<8x153xf32> to vector<8x130xf32>
    %40 = vector.extract_strided_slice %33 {offsets = [0, 6], sizes = [8, 130], strides = [1, 1]} : vector<8x153xf32> to vector<8x130xf32>
    %41 = vector.extract_strided_slice %33 {offsets = [0, 7], sizes = [8, 130], strides = [1, 1]} : vector<8x153xf32> to vector<8x130xf32>
    %42 = vector.extract_strided_slice %33 {offsets = [0, 8], sizes = [8, 130], strides = [1, 1]} : vector<8x153xf32> to vector<8x130xf32>
    %43 = vector.extract_strided_slice %33 {offsets = [0, 9], sizes = [8, 130], strides = [1, 1]} : vector<8x153xf32> to vector<8x130xf32>
    %44 = vector.extract_strided_slice %33 {offsets = [0, 10], sizes = [8, 130], strides = [1, 1]} : vector<8x153xf32> to vector<8x130xf32>
    %45 = vector.extract_strided_slice %33 {offsets = [0, 11], sizes = [8, 130], strides = [1, 1]} : vector<8x153xf32> to vector<8x130xf32>
    %46 = vector.extract_strided_slice %33 {offsets = [0, 12], sizes = [8, 130], strides = [1, 1]} : vector<8x153xf32> to vector<8x130xf32>
    %47 = vector.extract_strided_slice %33 {offsets = [0, 13], sizes = [8, 130], strides = [1, 1]} : vector<8x153xf32> to vector<8x130xf32>
    %48 = vector.extract_strided_slice %33 {offsets = [0, 14], sizes = [8, 130], strides = [1, 1]} : vector<8x153xf32> to vector<8x130xf32>
    %49 = vector.extract_strided_slice %33 {offsets = [0, 15], sizes = [8, 130], strides = [1, 1]} : vector<8x153xf32> to vector<8x130xf32>
    %50 = vector.extract_strided_slice %33 {offsets = [0, 16], sizes = [8, 130], strides = [1, 1]} : vector<8x153xf32> to vector<8x130xf32>
    %51 = vector.extract_strided_slice %33 {offsets = [0, 17], sizes = [8, 130], strides = [1, 1]} : vector<8x153xf32> to vector<8x130xf32>
    %52 = vector.extract_strided_slice %33 {offsets = [0, 18], sizes = [8, 130], strides = [1, 1]} : vector<8x153xf32> to vector<8x130xf32>
    %53 = vector.extract_strided_slice %33 {offsets = [0, 19], sizes = [8, 130], strides = [1, 1]} : vector<8x153xf32> to vector<8x130xf32>
    %54 = vector.extract_strided_slice %33 {offsets = [0, 20], sizes = [8, 130], strides = [1, 1]} : vector<8x153xf32> to vector<8x130xf32>
    %55 = vector.extract_strided_slice %33 {offsets = [0, 21], sizes = [8, 130], strides = [1, 1]} : vector<8x153xf32> to vector<8x130xf32>
    %56 = vector.extract_strided_slice %33 {offsets = [0, 22], sizes = [8, 130], strides = [1, 1]} : vector<8x153xf32> to vector<8x130xf32>
    %57 = vector.extract_strided_slice %33 {offsets = [0, 23], sizes = [8, 130], strides = [1, 1]} : vector<8x153xf32> to vector<8x130xf32>
    %58 = tpu.concatenate %34, %35, %36, %37, %38, %39, %40, %41, %42, %43, %44, %45, %46, %47, %48, %49 in 0 : vector<8x130xf32>, vector<8x130xf32>, vector<8x130xf32>, vector<8x130xf32>, vector<8x130xf32>, vector<8x130xf32>, vector<8x130xf32>, vector<8x130xf32>, vector<8x130xf32>, vector<8x130xf32>, vector<8x130xf32>, vector<8x130xf32>, vector<8x130xf32>, vector<8x130xf32>, vector<8x130xf32>, vector<8x130xf32> -> vector<128x130xf32>
    %59 = tpu.concatenate %50, %51, %52, %53, %54, %55, %56, %57 in 0 : vector<8x130xf32>, vector<8x130xf32>, vector<8x130xf32>, vector<8x130xf32>, vector<8x130xf32>, vector<8x130xf32>, vector<8x130xf32>, vector<8x130xf32> -> vector<64x130xf32>
    %60 = tpu.concatenate %58, %59 in 0 : vector<128x130xf32>, vector<64x130xf32> -> vector<192x130xf32>
    %61 = tpu.concatenate %30, %60 in 1 : vector<192x130xf32>, vector<192x130xf32> -> vector<192x260xf32>
    %c0_4 = arith.constant 0 : index
    %c0_5 = arith.constant 0 : index
    %62 = vector.load %arg2[%c0_4, %c0_5] : memref<16x192xf32, #tpu.memory_space<vmem>>, vector<16x192xf32>
    %cst_6 = arith.constant dense<0.000000e+00> : vector<16x260xf32>
    %63 = tpu.matmul %62, %61, %cst_6 {dimension_numbers = #tpu.dot_dimension_numbers<[1], [0], [0], [1], [0, 0, 1, 1], [], []>} : vector<16x192xf32>, vector<192x260xf32>, vector<16x260xf32> -> vector<16x260xf32>
    %c0_7 = arith.constant 0 : index
    %c0_8 = arith.constant 0 : index
    %64 = vector.load %arg3[%c0_7, %c0_8] : memref<16x1xf32, #tpu.memory_space<vmem>>, vector<16x1xf32>
    %65 = vector.broadcast %64 : vector<16x1xf32> to vector<16x260xf32>
    %66 = arith.addf %63, %65 : vector<16x260xf32>
    %cst_9 = arith.constant 0.000000e+00 : f32
    %67 = vector.broadcast %cst_9 : f32 to vector<16x260xf32>
    %68 = arith.maximumf %66, %67 : vector<16x260xf32>
    %c0_10 = arith.constant 0 : index
    %c0_11 = arith.constant 0 : index
    %69 = vector.load %arg4[%c0_10, %c0_11] : memref<16x6xf32, #tpu.memory_space<vmem>>, vector<16x6xf32>
    %70 = vector.extract_strided_slice %68 {offsets = [0, 0], sizes = [16, 130], strides = [1, 1]} : vector<16x260xf32> to vector<16x130xf32>
    %71 = vector.extract_strided_slice %70 {offsets = [0, 0], sizes = [16, 20], strides = [1, 1]} : vector<16x130xf32> to vector<16x20xf32>
    %cst_12 = arith.constant dense<0xFF800000> : vector<16xf32>
    %72 = vector.multi_reduction <maximumf>, %71, %cst_12 [1] : vector<16x20xf32> to vector<16xf32>
    %73 = vector.shape_cast %72 : vector<16xf32> to vector<16x1xf32>
    %74 = vector.extract_strided_slice %70 {offsets = [0, 20], sizes = [16, 21], strides = [1, 1]} : vector<16x130xf32> to vector<16x21xf32>
    %cst_13 = arith.constant dense<0xFF800000> : vector<16xf32>
    %75 = vector.multi_reduction <maximumf>, %74, %cst_13 [1] : vector<16x21xf32> to vector<16xf32>
    %76 = vector.shape_cast %75 : vector<16xf32> to vector<16x1xf32>
    %77 = vector.extract_strided_slice %70 {offsets = [0, 41], sizes = [16, 21], strides = [1, 1]} : vector<16x130xf32> to vector<16x21xf32>
    %cst_14 = arith.constant dense<0xFF800000> : vector<16xf32>
    %78 = vector.multi_reduction <maximumf>, %77, %cst_14 [1] : vector<16x21xf32> to vector<16xf32>
    %79 = vector.shape_cast %78 : vector<16xf32> to vector<16x1xf32>
    %80 = vector.extract_strided_slice %70 {offsets = [0, 62], sizes = [16, 21], strides = [1, 1]} : vector<16x130xf32> to vector<16x21xf32>
    %cst_15 = arith.constant dense<0xFF800000> : vector<16xf32>
    %81 = vector.multi_reduction <maximumf>, %80, %cst_15 [1] : vector<16x21xf32> to vector<16xf32>
    %82 = vector.shape_cast %81 : vector<16xf32> to vector<16x1xf32>
    %83 = vector.extract_strided_slice %70 {offsets = [0, 83], sizes = [16, 21], strides = [1, 1]} : vector<16x130xf32> to vector<16x21xf32>
    %cst_16 = arith.constant dense<0xFF800000> : vector<16xf32>
    %84 = vector.multi_reduction <maximumf>, %83, %cst_16 [1] : vector<16x21xf32> to vector<16xf32>
    %85 = vector.shape_cast %84 : vector<16xf32> to vector<16x1xf32>
    %86 = vector.extract_strided_slice %70 {offsets = [0, 104], sizes = [16, 21], strides = [1, 1]} : vector<16x130xf32> to vector<16x21xf32>
    %cst_17 = arith.constant dense<0xFF800000> : vector<16xf32>
    %87 = vector.multi_reduction <maximumf>, %86, %cst_17 [1] : vector<16x21xf32> to vector<16xf32>
    %88 = vector.shape_cast %87 : vector<16xf32> to vector<16x1xf32>
    %89 = tpu.concatenate %73, %76, %79, %82, %85, %88 in 1 : vector<16x1xf32>, vector<16x1xf32>, vector<16x1xf32>, vector<16x1xf32>, vector<16x1xf32>, vector<16x1xf32> -> vector<16x6xf32>
    %90 = arith.mulf %89, %69 : vector<16x6xf32>
    %cst_18 = arith.constant dense<0.000000e+00> : vector<16xf32>
    %91 = vector.multi_reduction <add>, %90, %cst_18 [1] : vector<16x6xf32> to vector<16xf32>
    %92 = vector.shape_cast %91 : vector<16xf32> to vector<16x1xf32>
    %cst_19 = arith.constant dense<0.000000e+00> : vector<1xf32>
    %93 = vector.multi_reduction <add>, %92, %cst_19 [0] : vector<16x1xf32> to vector<1xf32>
    %94 = vector.shape_cast %93 : vector<1xf32> to vector<1x1xf32>
    %95 = vector.extract_strided_slice %68 {offsets = [0, 130], sizes = [16, 130], strides = [1, 1]} : vector<16x260xf32> to vector<16x130xf32>
    %96 = vector.extract_strided_slice %95 {offsets = [0, 0], sizes = [16, 20], strides = [1, 1]} : vector<16x130xf32> to vector<16x20xf32>
    %cst_20 = arith.constant dense<0xFF800000> : vector<16xf32>
    %97 = vector.multi_reduction <maximumf>, %96, %cst_20 [1] : vector<16x20xf32> to vector<16xf32>
    %98 = vector.shape_cast %97 : vector<16xf32> to vector<16x1xf32>
    %99 = vector.extract_strided_slice %95 {offsets = [0, 20], sizes = [16, 21], strides = [1, 1]} : vector<16x130xf32> to vector<16x21xf32>
    %cst_21 = arith.constant dense<0xFF800000> : vector<16xf32>
    %100 = vector.multi_reduction <maximumf>, %99, %cst_21 [1] : vector<16x21xf32> to vector<16xf32>
    %101 = vector.shape_cast %100 : vector<16xf32> to vector<16x1xf32>
    %102 = vector.extract_strided_slice %95 {offsets = [0, 41], sizes = [16, 21], strides = [1, 1]} : vector<16x130xf32> to vector<16x21xf32>
    %cst_22 = arith.constant dense<0xFF800000> : vector<16xf32>
    %103 = vector.multi_reduction <maximumf>, %102, %cst_22 [1] : vector<16x21xf32> to vector<16xf32>
    %104 = vector.shape_cast %103 : vector<16xf32> to vector<16x1xf32>
    %105 = vector.extract_strided_slice %95 {offsets = [0, 62], sizes = [16, 21], strides = [1, 1]} : vector<16x130xf32> to vector<16x21xf32>
    %cst_23 = arith.constant dense<0xFF800000> : vector<16xf32>
    %106 = vector.multi_reduction <maximumf>, %105, %cst_23 [1] : vector<16x21xf32> to vector<16xf32>
    %107 = vector.shape_cast %106 : vector<16xf32> to vector<16x1xf32>
    %108 = vector.extract_strided_slice %95 {offsets = [0, 83], sizes = [16, 21], strides = [1, 1]} : vector<16x130xf32> to vector<16x21xf32>
    %cst_24 = arith.constant dense<0xFF800000> : vector<16xf32>
    %109 = vector.multi_reduction <maximumf>, %108, %cst_24 [1] : vector<16x21xf32> to vector<16xf32>
    %110 = vector.shape_cast %109 : vector<16xf32> to vector<16x1xf32>
    %111 = vector.extract_strided_slice %95 {offsets = [0, 104], sizes = [16, 21], strides = [1, 1]} : vector<16x130xf32> to vector<16x21xf32>
    %cst_25 = arith.constant dense<0xFF800000> : vector<16xf32>
    %112 = vector.multi_reduction <maximumf>, %111, %cst_25 [1] : vector<16x21xf32> to vector<16xf32>
    %113 = vector.shape_cast %112 : vector<16xf32> to vector<16x1xf32>
    %114 = tpu.concatenate %98, %101, %104, %107, %110, %113 in 1 : vector<16x1xf32>, vector<16x1xf32>, vector<16x1xf32>, vector<16x1xf32>, vector<16x1xf32>, vector<16x1xf32> -> vector<16x6xf32>
    %115 = arith.mulf %114, %69 : vector<16x6xf32>
    %cst_26 = arith.constant dense<0.000000e+00> : vector<16xf32>
    %116 = vector.multi_reduction <add>, %115, %cst_26 [1] : vector<16x6xf32> to vector<16xf32>
    %117 = vector.shape_cast %116 : vector<16xf32> to vector<16x1xf32>
    %cst_27 = arith.constant dense<0.000000e+00> : vector<1xf32>
    %118 = vector.multi_reduction <add>, %117, %cst_27 [0] : vector<16x1xf32> to vector<1xf32>
    %119 = vector.shape_cast %118 : vector<1xf32> to vector<1x1xf32>
    %120 = tpu.concatenate %94, %119 in 1 : vector<1x1xf32>, vector<1x1xf32> -> vector<1x2xf32>
    %c0_28 = arith.constant 0 : index
    %c0_29 = arith.constant 0 : index
    %121 = memref.load %arg5[%c0_28, %c0_29] : memref<1x1xf32, #tpu.memory_space<smem>>
    %122 = vector.broadcast %121 : f32 to vector<1x2xf32>
    %123 = arith.addf %120, %122 : vector<1x2xf32>
    %cst_30 = arith.constant 0.000000e+00 : f32
    %124 = vector.broadcast %cst_30 : f32 to vector<1x2xf32>
    %125 = arith.subf %124, %123 : vector<1x2xf32>
    %126 = math.exp %125 : vector<1x2xf32>
    %cst_31 = arith.constant 1.000000e+00 : f32
    %127 = vector.broadcast %cst_31 : f32 to vector<1x2xf32>
    %128 = arith.addf %127, %126 : vector<1x2xf32>
    %cst_32 = arith.constant 1.000000e+00 : f32
    %129 = vector.broadcast %cst_32 : f32 to vector<1x2xf32>
    %130 = arith.divf %129, %128 : vector<1x2xf32>
    %c0_33 = arith.constant 0 : index
    %c0_34 = arith.constant 0 : index
    %131 = vector.load %arg6[%c0_33, %c0_34] : memref<1x2xf32, #tpu.memory_space<vmem>>, vector<1x2xf32>
    tpu.vector_store %arg6[%c0_33, %c0_34], %130 {strides = array<i32>} : memref<1x2xf32, #tpu.memory_space<vmem>>, vector<1x2xf32>,
    return
  }
  func.func @transform_0(%arg0: i32) -> (i32, i32, i32) {
    %c0_i32 = arith.constant 0 : i32
    %c0_i32_0 = arith.constant 0 : i32
    %c0_i32_1 = arith.constant 0 : i32
    return %arg0, %c0_i32, %c0_i32_0 : i32, i32, i32
  }
  func.func @transform_1(%arg0: i32) -> (i32, i32) {
    %c0_i32 = arith.constant 0 : i32
    %c0_i32_0 = arith.constant 0 : i32
    %c0_i32_1 = arith.constant 0 : i32
    return %c0_i32, %c0_i32_0 : i32, i32
  }
  func.func @transform_2(%arg0: i32) -> (i32, i32) {
    %c0_i32 = arith.constant 0 : i32
    %c0_i32_0 = arith.constant 0 : i32
    %c0_i32_1 = arith.constant 0 : i32
    return %c0_i32, %c0_i32_0 : i32, i32
  }
  func.func @transform_3(%arg0: i32) -> (i32, i32) {
    %c0_i32 = arith.constant 0 : i32
    %c0_i32_0 = arith.constant 0 : i32
    %c0_i32_1 = arith.constant 0 : i32
    return %c0_i32, %c0_i32_0 : i32, i32
  }
  func.func @transform_4(%arg0: i32) -> (i32, i32) {
    %c0_i32 = arith.constant 0 : i32
    %c0_i32_0 = arith.constant 0 : i32
    %c0_i32_1 = arith.constant 0 : i32
    return %c0_i32, %c0_i32_0 : i32, i32
  }
  func.func @transform_5(%arg0: i32) -> (i32, i32) {
    %c0_i32 = arith.constant 0 : i32
    %c0_i32_0 = arith.constant 0 : i32
    return %c0_i32, %arg0 : i32, i32
  }
}

</mosaic_0001>

<llo_original>
// kernel: tpu_custom_call.1
$region0: #{tpu_custom_call.1}
  #allocation0 [shape = 'u32[]', space=smem, size = 0x4, offset = 0x4, fixed_abs, tag = 'smem constant byte address 0x4 - core index']
  #allocation1 [shape = 'u32[144,128]{1,0:T(1,128)}', space=vmem, size = 0x12000, scoped, tag = 'internal scratch']
  #allocation2 [shape = 'f32[1,1]{1,0:T(1,128)S(6)}', space=smem, size = 0x200, scoped, tag = 'scoped memory for tpu_custom_call.1']
  %s0 = inlined_call_operand.hbm [shape: f32[2,8,107], index: 0, kind: input, shape index: {}]
  %s1 = inlined_call_operand.vmem [shape: f32[16,192], index: 1, kind: input, shape index: {}]
  %s2 = inlined_call_operand.vmem [shape: f32[16,1], index: 2, kind: input, shape index: {}]
  %s3 = inlined_call_operand.vmem [shape: f32[16,6], index: 3, kind: input, shape index: {}]
  %s4 = inlined_call_operand.<no memory space> [shape: f32[1,1], index: 4, kind: input, shape index: {}]
  %s5 = inlined_call_operand.hbm [shape: f32[1,2], index: 5, kind: output, shape index: {}]
  %s6 = sld [smem:[#allocation0]]
  $region34: #{tpu_custom_call.1} parent=0
    _
  %s8 = ssub.s32 1, %s6
  %s9 = scalar_select 0, %s8, %s6
  %10 = sst [smem:[#allocation2]] %s4
  $region1: #{tpu_custom_call.1} parent=0
    #allocation3 [shape = 'u8[8192]{0}', space=vmem, size = 0x2000, scoped, tag = 'input window, operand 0, single buffered']
    #allocation4 [shape = 's32[1]{0}', space=sflag, size = 0x4, scoped, tag = 'scoped memory for tpu_custom_call.1']
    #allocation5 [shape = 's32[1]{0}', space=sflag, size = 0x4, scoped, tag = 'scoped memory for tpu_custom_call.1']
    #allocation6 [shape = 'u8[512]{0}', space=vmem, size = 0x400, scoped, tag = 'output window, operand 0, single buffered']
    %11 = vsyncpa [#allocation4], 0
    %12 = vsyncpa [#allocation5], 0
    // Predicated region
    $region2: #{tpu_custom_call.1} parent=1 // pred_check
      _
    $region3: #{tpu_custom_call.1} parent=1 // pred_check_branch
      %14 = sbr.rel (0) target = $region5
    $region4: #{tpu_custom_call.1} parent=1 // pred_region
      %s16 = ssub.s32 256, 256
      %17 = vsyncadd [#allocation4], %s16
      %s18 = sshll.u32 [#allocation3], 4
      %s19 = int_to_ptr.vmem [resolvable:$true] %s18
      %24 = dma.hbm_to_vmem [thread:$0]  %s0, 256, %s19, [#allocation4], 128, 128, 8
    $region5: #{tpu_custom_call.1} parent=1 // pred_fallthru
      _
    // Predicated region
    $region6: #{tpu_custom_call.1} parent=1 // pred_check
      _
    $region7: #{tpu_custom_call.1} parent=1 // pred_check_branch
      %26 = sbr.rel (0) target = $region9
    $region8: #{tpu_custom_call.1} parent=1 // pred_region
      _
    $region9: #{tpu_custom_call.1} parent=1 // pred_fallthru
      _
    // Predicated region
    $region10: #{tpu_custom_call.1} parent=1 // pred_check
      _
    $region11: #{tpu_custom_call.1} parent=1 // pred_check_branch
      %28 = sbr.rel (0) target = $region13
    $region12: #{tpu_custom_call.1} parent=1 // pred_region
      _
    $region13: #{tpu_custom_call.1} parent=1 // pred_fallthru
      _
    // Predicated region
    $region14: #{tpu_custom_call.1} parent=1 // pred_check
      _
    $region15: #{tpu_custom_call.1} parent=1 // pred_check_branch
      %30 = sbr.rel (0) target = $region17
    $region16: #{tpu_custom_call.1} parent=1 // pred_region
      _
    $region17: #{tpu_custom_call.1} parent=1 // pred_fallthru
      _
    // Predicated region
    $region18: #{tpu_custom_call.1} parent=1 // pred_check
      _
    $region19: #{tpu_custom_call.1} parent=1 // pred_check_branch
      %32 = sbr.rel (0) target = $region21
    $region20: #{tpu_custom_call.1} parent=1 // pred_region
      _
    $region21: #{tpu_custom_call.1} parent=1 // pred_fallthru
      _
    // Predicated region
    $region22: #{tpu_custom_call.1} parent=1 // pred_check
      _
    $region23: #{tpu_custom_call.1} parent=1 // pred_check_branch
      %34 = sbr.rel (0) target = $region25
    $region24: #{tpu_custom_call.1} parent=1 // pred_region
      %35 = dma.done [#allocation4], 256
    $region25: #{tpu_custom_call.1} parent=1 // pred_fallthru
      _
    %v36 = vld [vmem:[#allocation3] sm:$0xff]
    %38 = vrot.lane.b32.xlu0 %v36, 23
    %v39 = vpop.permute.xlu0 %38
    %vm41 = vcmask 187392
    %v42 = vsel %vm41, 0.25, %v39
    %vm43 = vcmask 15360
    %v44 = vsel %vm43, %v39, 0.25
    %47 = vrot.lane.b32.xlu0 %v42, 127
    %v48 = vpop.permute.xlu0 %47
    %49 = vrot.lane.b32.xlu0 %v44, 127
    %v50 = vpop.permute.xlu0 %49
    %vm51 = vcmask 1039360
    %v52 = vsel %vm51, %v48, %v50
    %55 = vrot.lane.b32.xlu0 %v42, 126
    %v56 = vpop.permute.xlu0 %55
    %57 = vrot.lane.b32.xlu0 %v44, 126
    %v58 = vpop.permute.xlu0 %57
    %vm59 = vcmask 1031168
    %v60 = vsel %vm59, %v56, %v58
    %63 = vrot.lane.b32.xlu0 %v42, 125
    %v64 = vpop.permute.xlu0 %63
    %65 = vrot.lane.b32.xlu0 %v44, 125
    %v66 = vpop.permute.xlu0 %65
    %vm67 = vcmask 1022976
    %v68 = vsel %vm67, %v64, %v66
    %71 = vrot.lane.b32.xlu0 %v42, 124
    %v72 = vpop.permute.xlu0 %71
    %73 = vrot.lane.b32.xlu0 %v44, 124
    %v74 = vpop.permute.xlu0 %73
    %vm75 = vcmask 1014784
    %v76 = vsel %vm75, %v72, %v74
    %79 = vrot.lane.b32.xlu0 %v42, 123
    %v80 = vpop.permute.xlu0 %79
    %81 = vrot.lane.b32.xlu0 %v44, 123
    %v82 = vpop.permute.xlu0 %81
    %vm83 = vcmask 1006592
    %v84 = vsel %vm83, %v80, %v82
    %87 = vrot.lane.b32.xlu0 %v42, 122
    %v88 = vpop.permute.xlu0 %87
    %89 = vrot.lane.b32.xlu0 %v44, 122
    %v90 = vpop.permute.xlu0 %89
    %vm91 = vcmask 998400
    %v92 = vsel %vm91, %v88, %v90
    %95 = vrot.lane.b32.xlu0 %v42, 121
    %v96 = vpop.permute.xlu0 %95
    %97 = vrot.lane.b32.xlu0 %v44, 121
    %v98 = vpop.permute.xlu0 %97
    %vm99 = vcmask 990208
    %v100 = vsel %vm99, %v96, %v98
    %103 = vrot.lane.b32.xlu0 %v42, 120
    %v104 = vpop.permute.xlu0 %103
    %105 = vrot.lane.b32.xlu0 %v44, 120
    %v106 = vpop.permute.xlu0 %105
    %vm107 = vcmask 982016
    %v108 = vsel %vm107, %v104, %v106
    %111 = vrot.lane.b32.xlu0 %v42, 119
    %v112 = vpop.permute.xlu0 %111
    %113 = vrot.lane.b32.xlu0 %v44, 119
    %v114 = vpop.permute.xlu0 %113
    %vm115 = vcmask 973824
    %v116 = vsel %vm115, %v112, %v114
    %119 = vrot.lane.b32.xlu0 %v42, 118
    %v120 = vpop.permute.xlu0 %119
    %121 = vrot.lane.b32.xlu0 %v44, 118
    %v122 = vpop.permute.xlu0 %121
    %vm123 = vcmask 965632
    %v124 = vsel %vm123, %v120, %v122
    %127 = vrot.lane.b32.xlu0 %v42, 117
    %v128 = vpop.permute.xlu0 %127
    %129 = vrot.lane.b32.xlu0 %v44, 117
    %v130 = vpop.permute.xlu0 %129
    %vm131 = vcmask 957440
    %v132 = vsel %vm131, %v128, %v130
    %135 = vrot.lane.b32.xlu0 %v42, 116
    %v136 = vpop.permute.xlu0 %135
    %137 = vrot.lane.b32.xlu0 %v44, 116
    %v138 = vpop.permute.xlu0 %137
    %vm139 = vcmask 949248
    %v140 = vsel %vm139, %v136, %v138
    %143 = vrot.lane.b32.xlu0 %v42, 115
    %v144 = vpop.permute.xlu0 %143
    %145 = vrot.lane.b32.xlu0 %v44, 115
    %v146 = vpop.permute.xlu0 %145
    %vm147 = vcmask 941056
    %v148 = vsel %vm147, %v144, %v146
    %151 = vrot.lane.b32.xlu0 %v42, 114
    %v152 = vpop.permute.xlu0 %151
    %153 = vrot.lane.b32.xlu0 %v44, 114
    %v154 = vpop.permute.xlu0 %153
    %vm155 = vcmask 932864
    %v156 = vsel %vm155, %v152, %v154
    %159 = vrot.lane.b32.xlu0 %v42, 113
    %v160 = vpop.permute.xlu0 %159
    %161 = vrot.lane.b32.xlu0 %v44, 113
    %v162 = vpop.permute.xlu0 %161
    %vm163 = vcmask 924672
    %v164 = vsel %vm163, %v160, %v162
    %167 = vrot.lane.b32.xlu0 %v42, 112
    %v168 = vpop.permute.xlu0 %167
    %169 = vrot.lane.b32.xlu0 %v44, 112
    %v170 = vpop.permute.xlu0 %169
    %171 = vrot.lane.b32.xlu0 %v52, 112
    %v172 = vpop.permute.xlu0 %171
    %173 = vrot.lane.b32.xlu0 %v50, 112
    %v174 = vpop.permute.xlu0 %173
    %175 = vrot.lane.b32.xlu0 %v60, 112
    %v176 = vpop.permute.xlu0 %175
    %177 = vrot.lane.b32.xlu0 %v58, 112
    %v178 = vpop.permute.xlu0 %177
    %179 = vrot.lane.b32.xlu0 %v68, 112
    %v180 = vpop.permute.xlu0 %179
    %181 = vrot.lane.b32.xlu0 %v66, 112
    %v182 = vpop.permute.xlu0 %181
    %183 = vrot.lane.b32.xlu0 %v76, 112
    %v184 = vpop.permute.xlu0 %183
    %185 = vrot.lane.b32.xlu0 %v74, 112
    %v186 = vpop.permute.xlu0 %185
    %187 = vrot.lane.b32.xlu0 %v84, 112
    %v188 = vpop.permute.xlu0 %187
    %189 = vrot.lane.b32.xlu0 %v82, 112
    %v190 = vpop.permute.xlu0 %189
    %191 = vrot.lane.b32.xlu0 %v92, 112
    %v192 = vpop.permute.xlu0 %191
    %193 = vrot.lane.b32.xlu0 %v90, 112
    %v194 = vpop.permute.xlu0 %193
    %195 = vrot.lane.b32.xlu0 %v100, 112
    %v196 = vpop.permute.xlu0 %195
    %197 = vrot.lane.b32.xlu0 %v98, 112
    %v198 = vpop.permute.xlu0 %197
    %vm199 = vcmask 916480
    %v200 = vsel %vm199, %v168, %v170
    %v201 = vsel %vm199, %v172, %v174
    %v202 = vsel %vm199, %v176, %v178
    %v203 = vsel %vm199, %v180, %v182
    %v204 = vsel %vm199, %v184, %v186
    %v205 = vsel %vm199, %v188, %v190
    %v206 = vsel %vm199, %v192, %v194
    %v207 = vsel %vm199, %v196, %v198
    %s224 = scalar_lea.vmem [#allocation3], 8
    %v225 = vld [vmem:[%s224] sm:$0xff]
    %227 = vrot.lane.b32.xlu0 %v225, 23
    %v228 = vpop.permute.xlu0 %227
    %v230 = vsel %vm41, 0.25, %v228
    %v231 = vsel %vm43, %v228, 0.25
    %234 = vrot.lane.b32.xlu0 %v230, 127
    %v235 = vpop.permute.xlu0 %234
    %236 = vrot.lane.b32.xlu0 %v231, 127
    %v237 = vpop.permute.xlu0 %236
    %v238 = vsel %vm51, %v235, %v237
    %239 = vrot.lane.b32.xlu0 %v230, 126
    %v240 = vpop.permute.xlu0 %239
    %241 = vrot.lane.b32.xlu0 %v231, 126
    %v242 = vpop.permute.xlu0 %241
    %v243 = vsel %vm59, %v240, %v242
    %244 = vrot.lane.b32.xlu0 %v230, 125
    %v245 = vpop.permute.xlu0 %244
    %246 = vrot.lane.b32.xlu0 %v231, 125
    %v247 = vpop.permute.xlu0 %246
    %v248 = vsel %vm67, %v245, %v247
    %249 = vrot.lane.b32.xlu0 %v230, 124
    %v250 = vpop.permute.xlu0 %249
    %251 = vrot.lane.b32.xlu0 %v231, 124
    %v252 = vpop.permute.xlu0 %251
    %v253 = vsel %vm75, %v250, %v252
    %254 = vrot.lane.b32.xlu0 %v230, 123
    %v255 = vpop.permute.xlu0 %254
    %256 = vrot.lane.b32.xlu0 %v231, 123
    %v257 = vpop.permute.xlu0 %256
    %v258 = vsel %vm83, %v255, %v257
    %259 = vrot.lane.b32.xlu0 %v230, 122
    %v260 = vpop.permute.xlu0 %259
    %261 = vrot.lane.b32.xlu0 %v231, 122
    %v262 = vpop.permute.xlu0 %261
    %v263 = vsel %vm91, %v260, %v262
    %264 = vrot.lane.b32.xlu0 %v230, 121
    %v265 = vpop.permute.xlu0 %264
    %266 = vrot.lane.b32.xlu0 %v231, 121
    %v267 = vpop.permute.xlu0 %266
    %v268 = vsel %vm99, %v265, %v267
    %269 = vrot.lane.b32.xlu0 %v230, 120
    %v270 = vpop.permute.xlu0 %269
    %271 = vrot.lane.b32.xlu0 %v231, 120
    %v272 = vpop.permute.xlu0 %271
    %v273 = vsel %vm107, %v270, %v272
    %274 = vrot.lane.b32.xlu0 %v230, 119
    %v275 = vpop.permute.xlu0 %274
    %276 = vrot.lane.b32.xlu0 %v231, 119
    %v277 = vpop.permute.xlu0 %276
    %v278 = vsel %vm115, %v275, %v277
    %279 = vrot.lane.b32.xlu0 %v230, 118
    %v280 = vpop.permute.xlu0 %279
    %281 = vrot.lane.b32.xlu0 %v231, 118
    %v282 = vpop.permute.xlu0 %281
    %v283 = vsel %vm123, %v280, %v282
    %284 = vrot.lane.b32.xlu0 %v230, 117
    %v285 = vpop.permute.xlu0 %284
    %286 = vrot.lane.b32.xlu0 %v231, 117
    %v287 = vpop.permute.xlu0 %286
    %v288 = vsel %vm131, %v285, %v287
    %289 = vrot.lane.b32.xlu0 %v230, 116
    %v290 = vpop.permute.xlu0 %289
    %291 = vrot.lane.b32.xlu0 %v231, 116
    %v292 = vpop.permute.xlu0 %291
    %v293 = vsel %vm139, %v290, %v292
    %294 = vrot.lane.b32.xlu0 %v230, 115
    %v295 = vpop.permute.xlu0 %294
    %296 = vrot.lane.b32.xlu0 %v231, 115
    %v297 = vpop.permute.xlu0 %296
    %v298 = vsel %vm147, %v295, %v297
    %299 = vrot.lane.b32.xlu0 %v230, 114
    %v300 = vpop.permute.xlu0 %299
    %301 = vrot.lane.b32.xlu0 %v231, 114
    %v302 = vpop.permute.xlu0 %301
    %v303 = vsel %vm155, %v300, %v302
    %304 = vrot.lane.b32.xlu0 %v230, 113
    %v305 = vpop.permute.xlu0 %304
    %306 = vrot.lane.b32.xlu0 %v231, 113
    %v307 = vpop.permute.xlu0 %306
    %v308 = vsel %vm163, %v305, %v307
    %309 = vrot.lane.b32.xlu0 %v230, 112
    %v310 = vpop.permute.xlu0 %309
    %311 = vrot.lane.b32.xlu0 %v231, 112
    %v312 = vpop.permute.xlu0 %311
    %313 = vrot.lane.b32.xlu0 %v238, 112
    %v314 = vpop.permute.xlu0 %313
    %315 = vrot.lane.b32.xlu0 %v237, 112
    %v316 = vpop.permute.xlu0 %315
    %317 = vrot.lane.b32.xlu0 %v243, 112
    %v318 = vpop.permute.xlu0 %317
    %319 = vrot.lane.b32.xlu0 %v242, 112
    %v320 = vpop.permute.xlu0 %319
    %321 = vrot.lane.b32.xlu0 %v248, 112
    %v322 = vpop.permute.xlu0 %321
    %323 = vrot.lane.b32.xlu0 %v247, 112
    %v324 = vpop.permute.xlu0 %323
    %325 = vrot.lane.b32.xlu0 %v253, 112
    %v326 = vpop.permute.xlu0 %325
    %327 = vrot.lane.b32.xlu0 %v252, 112
    %v328 = vpop.permute.xlu0 %327
    %329 = vrot.lane.b32.xlu0 %v258, 112
    %v330 = vpop.permute.xlu0 %329
    %331 = vrot.lane.b32.xlu0 %v257, 112
    %v332 = vpop.permute.xlu0 %331
    %333 = vrot.lane.b32.xlu0 %v263, 112
    %v334 = vpop.permute.xlu0 %333
    %335 = vrot.lane.b32.xlu0 %v262, 112
    %v336 = vpop.permute.xlu0 %335
    %337 = vrot.lane.b32.xlu0 %v268, 112
    %v338 = vpop.permute.xlu0 %337
    %339 = vrot.lane.b32.xlu0 %v267, 112
    %v340 = vpop.permute.xlu0 %339
    %v341 = vsel %vm199, %v310, %v312
    %v342 = vsel %vm199, %v314, %v316
    %v343 = vsel %vm199, %v318, %v320
    %v344 = vsel %vm199, %v322, %v324
    %v345 = vsel %vm199, %v326, %v328
    %v346 = vsel %vm199, %v330, %v332
    %v347 = vsel %vm199, %v334, %v336
    %v348 = vsel %vm199, %v338, %v340
    %349 = vrot.lane.b32.xlu0 %v230, 2
    %v350 = vpop.permute.xlu0 %349
    %351 = vrot.lane.b32.xlu0 %v238, 2
    %v352 = vpop.permute.xlu0 %351
    %353 = vrot.lane.b32.xlu0 %v243, 2
    %v354 = vpop.permute.xlu0 %353
    %355 = vrot.lane.b32.xlu0 %v248, 2
    %v356 = vpop.permute.xlu0 %355
    %357 = vrot.lane.b32.xlu0 %v253, 2
    %v358 = vpop.permute.xlu0 %357
    %359 = vrot.lane.b32.xlu0 %v258, 2
    %v360 = vpop.permute.xlu0 %359
    %361 = vrot.lane.b32.xlu0 %v263, 2
    %v362 = vpop.permute.xlu0 %361
    %363 = vrot.lane.b32.xlu0 %v268, 2
    %v364 = vpop.permute.xlu0 %363
    %365 = vrot.lane.b32.xlu0 %v273, 2
    %v366 = vpop.permute.xlu0 %365
    %367 = vrot.lane.b32.xlu0 %v278, 2
    %v368 = vpop.permute.xlu0 %367
    %369 = vrot.lane.b32.xlu0 %v283, 2
    %v370 = vpop.permute.xlu0 %369
    %371 = vrot.lane.b32.xlu0 %v288, 2
    %v372 = vpop.permute.xlu0 %371
    %373 = vrot.lane.b32.xlu0 %v293, 2
    %v374 = vpop.permute.xlu0 %373
    %375 = vrot.lane.b32.xlu0 %v298, 2
    %v376 = vpop.permute.xlu0 %375
    %377 = vrot.lane.b32.xlu0 %v303, 2
    %v378 = vpop.permute.xlu0 %377
    %379 = vrot.lane.b32.xlu0 %v308, 2
    %v380 = vpop.permute.xlu0 %379
    %381 = vrot.lane.b32.xlu0 %v341, 2
    %v382 = vpop.permute.xlu0 %381
    %383 = vrot.lane.b32.xlu0 %v342, 2
    %v384 = vpop.permute.xlu0 %383
    %385 = vrot.lane.b32.xlu0 %v343, 2
    %v386 = vpop.permute.xlu0 %385
    %387 = vrot.lane.b32.xlu0 %v344, 2
    %v388 = vpop.permute.xlu0 %387
    %389 = vrot.lane.b32.xlu0 %v345, 2
    %v390 = vpop.permute.xlu0 %389
    %391 = vrot.lane.b32.xlu0 %v346, 2
    %v392 = vpop.permute.xlu0 %391
    %393 = vrot.lane.b32.xlu0 %v347, 2
    %v394 = vpop.permute.xlu0 %393
    %395 = vrot.lane.b32.xlu0 %v348, 2
    %v396 = vpop.permute.xlu0 %395
    %v421 = vsel %vm43, %v44, %v350
    %v422 = vsel %vm43, %v50, %v352
    %v423 = vsel %vm43, %v58, %v354
    %v424 = vsel %vm43, %v66, %v356
    %v425 = vsel %vm43, %v74, %v358
    %v426 = vsel %vm43, %v82, %v360
    %v427 = vsel %vm43, %v90, %v362
    %v428 = vsel %vm43, %v98, %v364
    %v429 = vsel %vm43, %v106, %v366
    %v430 = vsel %vm43, %v114, %v368
    %v431 = vsel %vm43, %v122, %v370
    %v432 = vsel %vm43, %v130, %v372
    %v433 = vsel %vm43, %v138, %v374
    %v434 = vsel %vm43, %v146, %v376
    %v435 = vsel %vm43, %v154, %v378
    %v436 = vsel %vm43, %v162, %v380
    %v437 = vsel %vm43, %v170, %v382
    %v438 = vsel %vm43, %v174, %v384
    %v439 = vsel %vm43, %v178, %v386
    %v440 = vsel %vm43, %v182, %v388
    %v441 = vsel %vm43, %v186, %v390
    %v442 = vsel %vm43, %v190, %v392
    %v443 = vsel %vm43, %v194, %v394
    %v444 = vsel %vm43, %v198, %v396
    %v445 = vld [vmem:[%s1] sm:$0xff]
    %v446 = vld [vmem:[%s1 + $0x8] sm:$0xff]
    %v447 = vld [vmem:[%s1 + $0x10] sm:$0xff]
    %v448 = vld [vmem:[%s1 + $0x18] sm:$0xff]
    %v449 = vld [vmem:[%s2] sm:$0xff]
    %v450 = vld [vmem:[%s2 + $0x8] sm:$0xff]
    %452 = vset.pattern.permute.xlu0 0
    %453 = vperm.xlu0 %452, %v449
    %v454 = vpop.permute.xlu0 %453
    %457 = vset.pattern.permute.xlu0 0
    %458 = vperm.xlu0 %457, %v450
    %v459 = vpop.permute.xlu0 %458
    %vm461 = vcmask 523264
    %v463 = vsel %vm461, %v446, 0
    %v466 = vsel %vm461, %v448, 0
    %468 = vmatprep.subr.mxu0 %v436
    %469 = vmatpush1.msra.mxu0 %v164
    %470 = vmatprep.subr.mxu0 %v435
    %471 = vmatpush1.msra.mxu0 %v156
    %472 = vmatprep.subr.mxu0 %v434
    %473 = vmatpush1.msra.mxu0 %v148
    %474 = vmatprep.subr.mxu0 %v433
    %475 = vmatpush1.msra.mxu0 %v140
    %476 = vmatprep.subr.mxu0 %v432
    %477 = vmatpush1.msra.mxu0 %v132
    %478 = vmatprep.subr.mxu0 %v431
    %479 = vmatpush1.msra.mxu0 %v124
    %480 = vmatprep.subr.mxu0 %v430
    %481 = vmatpush1.msra.mxu0 %v116
    %482 = vmatprep.subr.mxu0 %v429
    %483 = vmatpush1.msra.mxu0 %v108
    %484 = vmatprep.subr.mxu0 %v428
    %485 = vmatpush1.msra.mxu0 %v100
    %486 = vmatprep.subr.mxu0 %v427
    %487 = vmatpush1.msra.mxu0 %v92
    %488 = vmatprep.subr.mxu0 %v426
    %489 = vmatpush1.msra.mxu0 %v84
    %490 = vmatprep.subr.mxu0 %v425
    %491 = vmatpush1.msra.mxu0 %v76
    %492 = vmatprep.subr.mxu0 %v424
    %493 = vmatpush1.msra.mxu0 %v68
    %494 = vmatprep.subr.mxu0 %v423
    %495 = vmatpush1.msra.mxu0 %v60
    %496 = vmatprep.subr.mxu0 %v422
    %497 = vmatpush1.msra.mxu0 %v52
    %498 = vmatprep.subr.mxu0 %v421
    %499 = vmatpush1.msra.mxu0 %v42
    %500 = vmatprep.subr.mxu0 0.0
    %501 = vmatpush2.msra.mxu0 0.0
    %502 = vmatprep.subr.mxu0 0.0
    %503 = vmatpush2.msra.mxu0 0.0
    %504 = vmatprep.subr.mxu0 0.0
    %505 = vmatpush2.msra.mxu0 0.0
    %506 = vmatprep.subr.mxu0 0.0
    %507 = vmatpush2.msra.mxu0 0.0
    %508 = vmatprep.subr.mxu0 0.0
    %509 = vmatpush2.msra.mxu0 0.0
    %510 = vmatprep.subr.mxu0 0.0
    %511 = vmatpush2.msra.mxu0 0.0
    %512 = vmatprep.subr.mxu0 0.0
    %513 = vmatpush2.msra.mxu0 0.0
    %514 = vmatprep.subr.mxu0 0.0
    %515 = vmatpush2.msra.mxu0 0.0
    %516 = vmatprep.subr.mxu0 %v444
    %517 = vmatpush2.msra.mxu0 %v207
    %518 = vmatprep.subr.mxu0 %v443
    %519 = vmatpush2.msra.mxu0 %v206
    %520 = vmatprep.subr.mxu0 %v442
    %521 = vmatpush2.msra.mxu0 %v205
    %522 = vmatprep.subr.mxu0 %v441
    %523 = vmatpush2.msra.mxu0 %v204
    %524 = vmatprep.subr.mxu0 %v440
    %525 = vmatpush2.msra.mxu0 %v203
    %526 = vmatprep.subr.mxu0 %v439
    %527 = vmatpush2.msra.mxu0 %v202
    %528 = vmatprep.subr.mxu0 %v438
    %529 = vmatpush2.msra.mxu0 %v201
    %530 = vmatprep.subr.mxu0 %v437
    %531 = vmatpush2.msra.mxu0 %v200
    %532 = vmatprep.mubr.f32.mxu0 %v463
    %533 = vmatmul.mubr.f32.gmra.mxu0 %v445
    %v534 = vpop.f32.mrf.mxu0
    %v535 = vadd.f32 %v454, %v534
    %v536 = vpop.f32.mrf.mxu0
    %v537 = vadd.f32 %v454, %v536
    %538 = vmatprep.mubr.f32.mxu0 %v466
    %539 = vmatmul.mubr.f32.gmra.mxu0 %v447
    %v540 = vpop.f32.mrf.mxu0
    %v541 = vadd.f32 %v459, %v540
    %v542 = vpop.f32.mrf.mxu0
    %v543 = vadd.f32 %v459, %v542
    %544 = vdwg.mxu0
    %v545 = vmax.f32 %v535, 0.0
    %v546 = vmax.f32 %v537, 0.0
    %v547 = vmax.f32 %v541, 0.0
    %v548 = vmax.f32 %v543, 0.0
    %v549 = vld [vmem:[%s3] sm:$0xff]
    %v550 = vld [vmem:[%s3 + $0x8] sm:$0xff]
    %vm551 = vcmask 162816
    %v552 = vsel %vm551, %v545, -inf
    %553 = vmax.xlane.f32.xlu0 %v552
    %v554 = vpop.xlane.xlu0 %553
    %v555 = vsel %vm551, %v547, -inf
    %556 = vmax.xlane.f32.xlu0 %v555
    %v557 = vpop.xlane.xlu0 %556
    %vm558 = vcmask 335008
    %v559 = vsel %vm558, %v545, -inf
    %560 = vmax.xlane.f32.xlu0 %v559
    %v561 = vpop.xlane.xlu0 %560
    %v562 = vsel %vm558, %v547, -inf
    %563 = vmax.xlane.f32.xlu0 %v562
    %v564 = vpop.xlane.xlu0 %563
    %vm565 = vcmask 507208
    %v566 = vsel %vm565, %v545, -inf
    %567 = vmax.xlane.f32.xlu0 %v566
    %v568 = vpop.xlane.xlu0 %567
    %v569 = vsel %vm565, %v547, -inf
    %570 = vmax.xlane.f32.xlu0 %v569
    %v571 = vpop.xlane.xlu0 %570
    %vm572 = vcmask 679408
    %v573 = vsel %vm572, %v545, -inf
    %574 = vmax.xlane.f32.xlu0 %v573
    %v575 = vpop.xlane.xlu0 %574
    %v576 = vsel %vm572, %v547, -inf
    %577 = vmax.xlane.f32.xlu0 %v576
    %v578 = vpop.xlane.xlu0 %577
    %vm579 = vcmask 851608
    %v580 = vsel %vm579, %v545, -inf
    %581 = vmax.xlane.f32.xlu0 %v580
    %v582 = vpop.xlane.xlu0 %581
    %v583 = vsel %vm579, %v547, -inf
    %584 = vmax.xlane.f32.xlu0 %v583
    %v585 = vpop.xlane.xlu0 %584
    %vm586 = vcmask 1023808
    %v587 = vsel %vm586, %v545, -inf
    %588 = vmax.xlane.f32.xlu0 %v587
    %v589 = vpop.xlane.xlu0 %588
    %v590 = vsel %vm586, %v547, -inf
    %591 = vmax.xlane.f32.xlu0 %v590
    %v592 = vpop.xlane.xlu0 %591
    %vm593 = vcmask 7168
    %v594 = vsel %vm593, %v554, %v561
    %v595 = vsel %vm593, %v557, %v564
    %v596 = vsel %vm43, %v594, %v568
    %v597 = vsel %vm43, %v595, %v571
    %vm598 = vcmask 23552
    %v599 = vsel %vm598, %v596, %v575
    %v600 = vsel %vm598, %v597, %v578
    %vm601 = vcmask 31744
    %v602 = vsel %vm601, %v599, %v582
    %v603 = vsel %vm601, %v600, %v585
    %vm604 = vcmask 39936
    %v605 = vsel %vm604, %v602, %v589
    %v606 = vsel %vm604, %v603, %v592
    %v607 = vmul.f32 %v605, %v549
    %v608 = vmul.f32 %v606, %v550
    %vm609 = vcmask 48128
    %v610 = vsel %vm609, %v607, 0.0
    %611 = vadd.xlane.f32.xlu0 %v610
    %v612 = vpop.xlane.xlu0 %611
    %v613 = vsel %vm609, %v608, 0.0
    %614 = vadd.xlane.f32.xlu0 %v613
    %v615 = vpop.xlane.xlu0 %614
    %v616 = vadd.f32 %v612, %v615
    %v617 = vrot.slane %v616, 4
    %v618 = vadd.f32 %v616, %v617
    %v619 = vrot.slane %v618, 2
    %v620 = vadd.f32 %v618, %v619
    %v621 = vrot.slane %v620, 1
    %v622 = vadd.f32 %v620, %v621
    %vm623 = vcmask 179216
    %v624 = vsel %vm623, %v546, -inf
    %625 = vmax.xlane.f32.xlu0 %v624
    %v626 = vpop.xlane.xlu0 %625
    %v627 = vsel %vm623, %v548, -inf
    %628 = vmax.xlane.f32.xlu0 %v627
    %v629 = vpop.xlane.xlu0 %628
    %vm630 = vcmask 351408
    %v631 = vsel %vm630, %v546, -inf
    %632 = vmax.xlane.f32.xlu0 %v631
    %v633 = vpop.xlane.xlu0 %632
    %v634 = vsel %vm630, %v548, -inf
    %635 = vmax.xlane.f32.xlu0 %v634
    %v636 = vpop.xlane.xlu0 %635
    %vm637 = vcmask 523608
    %v638 = vsel %vm637, %v546, -inf
    %639 = vmax.xlane.f32.xlu0 %v638
    %v640 = vpop.xlane.xlu0 %639
    %v641 = vsel %vm637, %v548, -inf
    %642 = vmax.xlane.f32.xlu0 %v641
    %v643 = vpop.xlane.xlu0 %642
    %vm644 = vcmask 695808
    %v645 = vsel %vm644, %v546, -inf
    %646 = vmax.xlane.f32.xlu0 %v645
    %v647 = vpop.xlane.xlu0 %646
    %v648 = vsel %vm644, %v548, -inf
    %649 = vmax.xlane.f32.xlu0 %v648
    %v650 = vpop.xlane.xlu0 %649
    %vm651 = vcmask 868008
    %v652 = vsel %vm651, %v546, -inf
    %653 = vmax.xlane.f32.xlu0 %v652
    %v654 = vpop.xlane.xlu0 %653
    %v655 = vsel %vm651, %v548, -inf
    %656 = vmax.xlane.f32.xlu0 %v655
    %v657 = vpop.xlane.xlu0 %656
    %vm658 = vcmask 1040208
    %v659 = vsel %vm658, %v546, -inf
    %660 = vmax.xlane.f32.xlu0 %v659
    %v661 = vpop.xlane.xlu0 %660
    %v662 = vsel %vm658, %v548, -inf
    %663 = vmax.xlane.f32.xlu0 %v662
    %v664 = vpop.xlane.xlu0 %663
    %v665 = vsel %vm593, %v626, %v633
    %v666 = vsel %vm593, %v629, %v636
    %v667 = vsel %vm43, %v665, %v640
    %v668 = vsel %vm43, %v666, %v643
    %v669 = vsel %vm598, %v667, %v647
    %v670 = vsel %vm598, %v668, %v650
    %v671 = vsel %vm601, %v669, %v654
    %v672 = vsel %vm601, %v670, %v657
    %v673 = vsel %vm604, %v671, %v661
    %v674 = vsel %vm604, %v672, %v664
    %v675 = vmul.f32 %v673, %v549
    %v676 = vmul.f32 %v674, %v550
    %v677 = vsel %vm609, %v675, 0.0
    %678 = vadd.xlane.f32.xlu0 %v677
    %v679 = vpop.xlane.xlu0 %678
    %v680 = vsel %vm609, %v676, 0.0
    %681 = vadd.xlane.f32.xlu0 %v680
    %v682 = vpop.xlane.xlu0 %681
    %v683 = vadd.f32 %v679, %v682
    %v684 = vrot.slane %v683, 4
    %v685 = vadd.f32 %v683, %v684
    %v686 = vrot.slane %v685, 2
    %v687 = vadd.f32 %v685, %v686
    %v688 = vrot.slane %v687, 1
    %v689 = vadd.f32 %v687, %v688
    %v690 = vsel %vm593, %v622, %v689
    %s691 = sld [smem:[#allocation2]]
    %v692 = vstv %s691
    %v693 = vadd.f32 %v690, %v692
    %v694 = vsub.f32 0.0, %v693
    %v695 = vmul.f32 %v694, 1.442695
    %v696 = vpow.pop %v695
    %v697 = vadd.f32 %v696, 1.0
    %v698 = vrcp.pop %v697
    %v699 = vmul.f32 1.0, %v698
    %vm700 = vcmask 8192
    %701 = vst.msk [vmem:[#allocation6] sm:$0x1] %vm700, %v699
    // Predicated region
    $region26: #{tpu_custom_call.1} parent=1 // pred_check
      _
    $region27: #{tpu_custom_call.1} parent=1 // pred_check_branch
      %703 = sbr.rel (0) target = $region29
    $region28: #{tpu_custom_call.1} parent=1 // pred_region
      %s705 = ssub.s32 16, 16
      %706 = vsyncadd [#allocation5], %s705
      %s708 = sshll.u32 [#allocation6], 4
      %s709 = int_to_ptr.vmem [resolvable:$true] %s708
      %711 = dma.vmem_to_hbm [thread:$0]  %s709, 16, %s5, [#allocation5]
    $region29: #{tpu_custom_call.1} parent=1 // pred_fallthru
      _
    // Predicated region
    $region30: #{tpu_custom_call.1} parent=1 // pred_check
      _
    $region31: #{tpu_custom_call.1} parent=1 // pred_check_branch
      %713 = sbr.rel (0) target = $region33
    $region32: #{tpu_custom_call.1} parent=1 // pred_region
      %714 = dma.done [#allocation5], 16
    $region33: #{tpu_custom_call.1} parent=1 // pred_fallthru
      _
    %715 = vsyncpa [#allocation4], 1
    %716 = vsyncpa [#allocation5], 1

</llo_original>
